<compile_context>
chip_gen: v7x
topology: tpu7x:2x2x1
jax: 0.10.0
libtpu: 0.0.40
codegen_flags: <defaults>
</compile_context>

<pallas_src>
import functools

import jax
import jax.numpy as jnp
from jax.experimental import pallas as pl
from jax.experimental.pallas import tpu as pltpu


def _soft_quantize_mcr_kernel(x_ref, c_ref, ct_ref, csq_ref, out_ref, q_ref, *,
                              sigma):
    """One lane-dense tile of columns: distances -> softmax over L -> c @ q."""
    x = x_ref[...].astype(jnp.float32)        # (m, TN)
    c = c_ref[...].astype(jnp.float32)        # (m, L)   resident center table
    ct = ct_ref[...].astype(jnp.float32)      # (L, m)   precomputed c^T
    csq = csq_ref[...].astype(jnp.float32)    # (L, 1)   precomputed ||c||^2

    # d[l, n] = ||x[:, n]||^2 - 2 * (c^T x)[l, n] + ||c[:, l]||^2
    xsq = jnp.sum(x * x, axis=0, keepdims=True)                    # (1, TN)
    cross = jnp.dot(ct, x, preferred_element_type=jnp.float32)     # (L, TN)
    d = (xsq - 2.0 * cross) + csq                                  # (L, TN)

    # softmax(-sigma * d) over the L (sublane) axis, numerically stabilized.
    logits = (-sigma) * d
    logits = logits - jnp.max(logits, axis=0, keepdims=True)
    e = jnp.exp(logits)
    inv_denom = pl.reciprocal(jnp.sum(e, axis=0, keepdims=True), approx=True)
    q = e * inv_denom                                              # (L, TN)

    q_ref[...] = q.astype(q_ref.dtype)
    # out[j, n] = sum_l c[j, l] * q[l, n]  (== (q @ c.T).T, no transpose needed)
    out_ref[...] = jnp.dot(c, q, preferred_element_type=jnp.float32).astype(
        out_ref.dtype)


def _round_up(v, k):
    return ((v + k - 1) // k) * k


def soft_quantize_mcr_forward(x, c, *, n_features, m, L, sigma,
                              tile_n=2048, out_dtype=jnp.float32):
    """Pallas implementation of SoftQuantizeMCR.forward (quant_mode='soft').

    Args:
      x: (b, r) latent features, r = n_features * m.
      c: (m, L) cluster centers.
      sigma: static scalar temperature (pass hard_sigma for quant_mode='hard').
      tile_n: columns per grid step (rounded down to a multiple of 128).
      out_dtype: dtype of `out` and `q` (set jnp.bfloat16 to halve HBM write
        traffic if downstream tolerates it; compute stays in f32 either way).
    Returns:
      [out (b, r), x_view (b, n_features, m), q (b, n_features, L)]
    """
    b, r = x.shape
    assert r == n_features * m, "r must equal n_features * m"
    N = b * n_features

    # Transposed, lane-dense layout: the big N axis goes last.
    x_t = x.reshape(N, m).astype(jnp.float32).T            # (m, N)
    c32 = c.astype(jnp.float32)                            # (m, L)
    ct = c32.T                                             # (L, m)  hoisted transpose
    csq = jnp.sum(c32 * c32, axis=0)[:, None]              # (L, 1)  hoisted ||c||^2

    # Pick a lane-dense tile along N (multiple of 128).  Keep >= 2 grid steps
    # when N is big enough so both v7x TensorCores get work.
    tile_n = max(128, (int(tile_n) // 128) * 128)
    n_lane = _round_up(N, 128)
    tile_n = min(tile_n, n_lane)
    half = _round_up((N + 1) // 2, 128)
    if n_lane >= 2 * 128 and tile_n > half:
        tile_n = half
    N_pad = _round_up(N, tile_n)
    if N_pad != N:
        # Zero-pad the tail; padded columns compute harmless finite values and
        # are sliced away below (no divisibility assert needed).
        x_t = jnp.pad(x_t, ((0, 0), (0, N_pad - N)))

    kernel = functools.partial(_soft_quantize_mcr_kernel, sigma=float(sigma))

    out_t, q_t = pl.pallas_call(
        kernel,
        out_shape=(
            jax.ShapeDtypeStruct((m, N_pad), out_dtype),
            jax.ShapeDtypeStruct((L, N_pad), out_dtype),
        ),
        grid=(N_pad // tile_n,),
        in_specs=[
            pl.BlockSpec((m, tile_n), lambda i: (0, i)),   # x columns (lane-dense)
            pl.BlockSpec((m, L), lambda i: (0, 0)),        # center table (grid-invariant)
            pl.BlockSpec((L, m), lambda i: (0, 0)),        # c^T (grid-invariant)
            pl.BlockSpec((L, 1), lambda i: (0, 0)),        # ||c||^2 (grid-invariant)
        ],
        out_specs=(
            pl.BlockSpec((m, tile_n), lambda i: (0, i)),   # out^T
            pl.BlockSpec((L, tile_n), lambda i: (0, i)),   # q^T
        ),
        compiler_params=pltpu.CompilerParams(
            dimension_semantics=("parallel",),
        ),
    )(x_t, c32, ct, csq)

    out = out_t[:, :N].T.reshape(b, r)
    q = q_t[:, :N].T.reshape(b, n_features, L)
    x_view = x.reshape(b, n_features, m)
    return [out, x_view, q]


def _reference(x, c, *, n_features, m, L, sigma):
    """Pure-JAX mirror of the PyTorch forward (for correctness checking)."""
    b = x.shape[0]
    xf = x.astype(jnp.float32)
    cf = c.astype(jnp.float32)
    z = xf.reshape(b, n_features, m, 1)
    cc = cf.reshape(1, 1, m, L)
    d = jnp.sum((z - cc) ** 2, axis=2)                     # (b, nf, L)
    q = jax.nn.softmax(-sigma * d, axis=2)
    out = jnp.einsum("bfl,ml->bfm", q, cf).reshape(b, n_features * m)
    return out, xf.reshape(b, n_features, m), q


if __name__ == "__main__":
    # Module hyperparameters (small, consistent with SoftQuantizeMCR(r, L, m)).
    r, L, m = 32, 16, 4
    n_features = r // m
    sigma = 1.0            # quant_mode='soft' -> uses self.sigma (static float)

    key = jax.random.PRNGKey(0)
    kx, kc, kx2 = jax.random.split(key, 3)
    c = jax.random.normal(kc, (m, L), dtype=jnp.float32)   # stand-in for init_centers(c)

    # Small case: single grid step, N=64 padded to 128 lanes.
    b = 8
    x = jax.random.normal(kx, (b, r), dtype=jnp.float32)
    out, x_view, q = soft_quantize_mcr_forward(
        x, c, n_features=n_features, m=m, L=L, sigma=sigma)
    jax.block_until_ready((out, x_view, q))

    ref_out, ref_xv, ref_q = _reference(
        x, c, n_features=n_features, m=m, L=L, sigma=sigma)
    assert out.shape == (b, r)
    assert x_view.shape == (b, n_features, m)
    assert q.shape == (b, n_features, L)
    # Tolerances account for the approximate (EUP) reciprocal in the softmax.
    assert jnp.allclose(jnp.sum(q, axis=-1), 1.0, atol=1e-2)
    assert jnp.allclose(q, ref_q, rtol=1e-2, atol=1e-3)
    assert jnp.allclose(out, ref_out, rtol=1e-2, atol=1e-3)
    assert jnp.allclose(x_view, ref_xv)

    # Larger case (bs=200 as in the module default): exercises a multi-step
    # grid plus tail padding (N = 1600 -> 2 tiles of 896 columns).
    b2 = 200
    x2 = jax.random.normal(kx2, (b2, r), dtype=jnp.float32)
    out2, _, q2 = soft_quantize_mcr_forward(
        x2, c, n_features=n_features, m=m, L=L, sigma=sigma)
    jax.block_until_ready((out2, q2))
    ref_out2, _, ref_q2 = _reference(
        x2, c, n_features=n_features, m=m, L=L, sigma=sigma)
    assert jnp.allclose(q2, ref_q2, rtol=1e-2, atol=1e-3)
    assert jnp.allclose(out2, ref_out2, rtol=1e-2, atol=1e-3)

    print("KERNEL_OK")
</pallas_src>

<mosaic_0001>
module attributes {stable_mosaic.version = 11 : i64} {
  func.func @_soft_quantize_mcr_kernel(%arg0: i32, %arg1: memref<4x128xf32, #tpu.memory_space<vmem>>, %arg2: memref<4x16xf32, #tpu.memory_space<vmem>>, %arg3: memref<16x4xf32, #tpu.memory_space<vmem>>, %arg4: memref<16x1xf32, #tpu.memory_space<vmem>>, %arg5: memref<4x128xf32, #tpu.memory_space<vmem>>, %arg6: memref<16x128xf32, #tpu.memory_space<vmem>>) attributes {dimension_semantics = [#tpu.dimension_semantics<parallel>], iteration_bounds = array<i64: 1>, scalar_prefetch = 0 : i64, scratch_operands = 0 : i64, tpu.core_type = #tpu.core_type<tc>, window_params = [{transform_indices = @transform_0, window_bounds = array<i64: 4, 128>}, {pipeline_mode = #tpu.pipeline_mode<synchronous>, transform_indices = @transform_1, window_bounds = array<i64: 4, 16>}, {pipeline_mode = #tpu.pipeline_mode<synchronous>, transform_indices = @transform_2, window_bounds = array<i64: 16, 4>}, {pipeline_mode = #tpu.pipeline_mode<synchronous>, transform_indices = @transform_3, window_bounds = array<i64: 16, 1>}, {transform_indices = @transform_4, window_bounds = array<i64: 4, 128>}, {transform_indices = @transform_5, window_bounds = array<i64: 16, 128>}]} {
    %c0 = arith.constant 0 : index
    %c0_0 = arith.constant 0 : index
    %0 = vector.load %arg1[%c0, %c0_0] : memref<4x128xf32, #tpu.memory_space<vmem>>, vector<4x128xf32>
    %c0_1 = arith.constant 0 : index
    %c0_2 = arith.constant 0 : index
    %1 = vector.load %arg2[%c0_1, %c0_2] : memref<4x16xf32, #tpu.memory_space<vmem>>, vector<4x16xf32>
    %c0_3 = arith.constant 0 : index
    %c0_4 = arith.constant 0 : index
    %2 = vector.load %arg3[%c0_3, %c0_4] : memref<16x4xf32, #tpu.memory_space<vmem>>, vector<16x4xf32>
    %c0_5 = arith.constant 0 : index
    %c0_6 = arith.constant 0 : index
    %3 = vector.load %arg4[%c0_5, %c0_6] : memref<16x1xf32, #tpu.memory_space<vmem>>, vector<16x1xf32>
    %4 = arith.mulf %0, %0 : vector<4x128xf32>
    %cst = arith.constant dense<0.000000e+00> : vector<128xf32>
    %5 = vector.multi_reduction <add>, %4, %cst [0] : vector<4x128xf32> to vector<128xf32>
    %6 = vector.shape_cast %5 : vector<128xf32> to vector<1x128xf32>
    %cst_7 = arith.constant dense<0.000000e+00> : vector<16x128xf32>
    %7 = tpu.matmul %2, %0, %cst_7 {dimension_numbers = #tpu.dot_dimension_numbers<[1], [0], [0], [1], [0, 0, 1, 1], [], []>} : vector<16x4xf32>, vector<4x128xf32>, vector<16x128xf32> -> vector<16x128xf32>
    %cst_8 = arith.constant 2.000000e+00 : f32
    %8 = vector.broadcast %cst_8 : f32 to vector<16x128xf32>
    %9 = arith.mulf %8, %7 : vector<16x128xf32>
    %10 = vector.broadcast %6 : vector<1x128xf32> to vector<16x128xf32>
    %11 = arith.subf %10, %9 : vector<16x128xf32>
    %12 = vector.broadcast %3 : vector<16x1xf32> to vector<16x128xf32>
    %13 = arith.addf %11, %12 : vector<16x128xf32>
    %cst_9 = arith.constant -1.000000e+00 : f32
    %14 = vector.broadcast %cst_9 : f32 to vector<16x128xf32>
    %15 = arith.mulf %14, %13 : vector<16x128xf32>
    %cst_10 = arith.constant dense<0xFF800000> : vector<128xf32>
    %16 = vector.multi_reduction <maximumf>, %15, %cst_10 [0] : vector<16x128xf32> to vector<128xf32>
    %17 = vector.shape_cast %16 : vector<128xf32> to vector<1x128xf32>
    %18 = vector.broadcast %17 : vector<1x128xf32> to vector<16x128xf32>
    %19 = arith.subf %15, %18 : vector<16x128xf32>
    %20 = math.exp %19 : vector<16x128xf32>
    %cst_11 = arith.constant dense<0.000000e+00> : vector<128xf32>
    %21 = vector.multi_reduction <add>, %20, %cst_11 [0] : vector<16x128xf32> to vector<128xf32>
    %22 = vector.shape_cast %21 : vector<128xf32> to vector<1x128xf32>
    %23 = tpu.reciprocal %22 {approx = true} : vector<1x128xf32> -> vector<1x128xf32>
    %24 = vector.broadcast %23 : vector<1x128xf32> to vector<16x128xf32>
    %25 = arith.mulf %20, %24 : vector<16x128xf32>
    %c0_12 = arith.constant 0 : index
    %c0_13 = arith.constant 0 : index
    %26 = vector.load %arg6[%c0_12, %c0_13] : memref<16x128xf32, #tpu.memory_space<vmem>>, vector<16x128xf32>
    tpu.vector_store %arg6[%c0_12, %c0_13], %25 {strides = array<i32>} : memref<16x128xf32, #tpu.memory_space<vmem>>, vector<16x128xf32>,
    %cst_14 = arith.constant dense<0.000000e+00> : vector<4x128xf32>
    %27 = tpu.matmul %1, %25, %cst_14 {dimension_numbers = #tpu.dot_dimension_numbers<[1], [0], [0], [1], [0, 0, 1, 1], [], []>} : vector<4x16xf32>, vector<16x128xf32>, vector<4x128xf32> -> vector<4x128xf32>
    %c0_15 = arith.constant 0 : index
    %c0_16 = arith.constant 0 : index
    %28 = vector.load %arg5[%c0_15, %c0_16] : memref<4x128xf32, #tpu.memory_space<vmem>>, vector<4x128xf32>
    tpu.vector_store %arg5[%c0_15, %c0_16], %27 {strides = array<i32>} : memref<4x128xf32, #tpu.memory_space<vmem>>, vector<4x128xf32>,
    return
  }
  func.func @transform_0(%arg0: i32) -> (i32, i32) {
    %c0_i32 = arith.constant 0 : i32
    %c0_i32_0 = arith.constant 0 : i32
    return %c0_i32, %arg0 : i32, i32
  }
  func.func @transform_1(%arg0: i32) -> (i32, i32) {
    %c0_i32 = arith.constant 0 : i32
    %c0_i32_0 = arith.constant 0 : i32
    %c0_i32_1 = arith.constant 0 : i32
    return %c0_i32, %c0_i32_0 : i32, i32
  }
  func.func @transform_2(%arg0: i32) -> (i32, i32) {
    %c0_i32 = arith.constant 0 : i32
    %c0_i32_0 = arith.constant 0 : i32
    %c0_i32_1 = arith.constant 0 : i32
    return %c0_i32, %c0_i32_0 : i32, i32
  }
  func.func @transform_3(%arg0: i32) -> (i32, i32) {
    %c0_i32 = arith.constant 0 : i32
    %c0_i32_0 = arith.constant 0 : i32
    %c0_i32_1 = arith.constant 0 : i32
    return %c0_i32, %c0_i32_0 : i32, i32
  }
  func.func @transform_4(%arg0: i32) -> (i32, i32) {
    %c0_i32 = arith.constant 0 : i32
    %c0_i32_0 = arith.constant 0 : i32
    return %c0_i32, %arg0 : i32, i32
  }
  func.func @transform_5(%arg0: i32) -> (i32, i32) {
    %c0_i32 = arith.constant 0 : i32
    %c0_i32_0 = arith.constant 0 : i32
    return %c0_i32, %arg0 : i32, i32
  }
}

</mosaic_0001>

<llo_original>
// kernel: tpu_custom_call.1
$region0: #{tpu_custom_call.1}
  #allocation0 [shape = 'u32[]', space=smem, size = 0x4, offset = 0x4, fixed_abs, tag = 'smem constant byte address 0x4 - core index']
  #allocation1 [shape = 'u32[144,128]{1,0:T(1,128)}', space=vmem, size = 0x12000, scoped, tag = 'internal scratch']
  %s0 = inlined_call_operand.vmem [shape: f32[4,128], index: 0, kind: input, shape index: {}]
  %s1 = inlined_call_operand.vmem [shape: f32[4,16], index: 1, kind: input, shape index: {}]
  %s2 = inlined_call_operand.vmem [shape: f32[16,4], index: 2, kind: input, shape index: {}]
  %s3 = inlined_call_operand.vmem [shape: f32[16,1], index: 3, kind: input, shape index: {}]
  %s4 = inlined_call_operand.hbm [shape: f32[4,128], index: 4, kind: output, shape index: {0}]
  %s5 = inlined_call_operand.hbm [shape: f32[16,128], index: 5, kind: output, shape index: {1}]
  %6 = xla_tuple %s4, %s5
  %s7 = sld [smem:[#allocation0]]
  $region34: #{tpu_custom_call.1} parent=0
    _
  %s9 = ssub.s32 1, %s7
  %s10 = scalar_select 0, %s9, %s7
  $region1: #{tpu_custom_call.1} parent=0
    #allocation2 [shape = 'u8[2048]{0}', space=vmem, size = 0x800, scoped, tag = 'output window, operand 0, single buffered']
    #allocation3 [shape = 's32[1]{0}', space=sflag, size = 0x4, scoped, tag = 'scoped memory for tpu_custom_call.1']
    #allocation4 [shape = 'u8[8192]{0}', space=vmem, size = 0x2000, scoped, tag = 'output window, operand 1, single buffered']
    #allocation5 [shape = 's32[1]{0}', space=sflag, size = 0x4, scoped, tag = 'scoped memory for tpu_custom_call.1']
    %11 = vsyncpa [#allocation3], 0
    %12 = vsyncpa [#allocation5], 0
    // Predicated region
    $region2: #{tpu_custom_call.1} parent=1 // pred_check
      _
    $region3: #{tpu_custom_call.1} parent=1 // pred_check_branch
      %14 = sbr.rel (0) target = $region5
    $region4: #{tpu_custom_call.1} parent=1 // pred_region
      _
    $region5: #{tpu_custom_call.1} parent=1 // pred_fallthru
      _
    // Predicated region
    $region6: #{tpu_custom_call.1} parent=1 // pred_check
      _
    $region7: #{tpu_custom_call.1} parent=1 // pred_check_branch
      %16 = sbr.rel (0) target = $region9
    $region8: #{tpu_custom_call.1} parent=1 // pred_region
      _
    $region9: #{tpu_custom_call.1} parent=1 // pred_fallthru
      _
    // Predicated region
    $region10: #{tpu_custom_call.1} parent=1 // pred_check
      _
    $region11: #{tpu_custom_call.1} parent=1 // pred_check_branch
      %18 = sbr.rel (0) target = $region13
    $region12: #{tpu_custom_call.1} parent=1 // pred_region
      _
    $region13: #{tpu_custom_call.1} parent=1 // pred_fallthru
      _
    // Predicated region
    $region14: #{tpu_custom_call.1} parent=1 // pred_check
      _
    $region15: #{tpu_custom_call.1} parent=1 // pred_check_branch
      %20 = sbr.rel (0) target = $region17
    $region16: #{tpu_custom_call.1} parent=1 // pred_region
      _
    $region17: #{tpu_custom_call.1} parent=1 // pred_fallthru
      _
    %v21 = vld [vmem:[%s0] sm:$0xf]
    %v22 = vld [vmem:[%s1] sm:$0xf]
    %v23 = vld [vmem:[%s2] sm:$0xff]
    %v24 = vld [vmem:[%s2 + $0x8] sm:$0xff]
    %v25 = vld [vmem:[%s3] sm:$0xff]
    %v26 = vld [vmem:[%s3 + $0x8] sm:$0xff]
    %v27 = vmul.f32 %v21, %v21
    %vm28 = vcmask 1043456
    %v29 = vsel %vm28, %v27, 0.0
    %v30 = vrot.slane %v29, 4
    %v31 = vadd.f32 %v29, %v30
    %v32 = vrot.slane %v31, 2
    %v33 = vadd.f32 %v31, %v32
    %v34 = vrot.slane %v33, 1
    %v35 = vadd.f32 %v33, %v34
    %vm36 = vcmask 31744
    %v38 = vsel %vm36, %v23, 0
    %v41 = vsel %vm36, %v24, 0
    %v44 = vsel %vm28, %v21, 0
    %46 = vmatprep.subr.mxu0 0.0
    %47 = vmatpush1.msra.mxu0 %v44
    %48 = vmatprep.subr.mxu0 0.0
    %49 = vmatpush1.msra.mxu0 0.0
    %50 = vmatprep.subr.mxu0 0.0
    %51 = vmatpush1.msra.mxu0 0.0
    %52 = vmatprep.subr.mxu0 0.0
    %53 = vmatpush1.msra.mxu0 0.0
    %54 = vmatprep.subr.mxu0 0.0
    %55 = vmatpush1.msra.mxu0 0.0
    %56 = vmatprep.subr.mxu0 0.0
    %57 = vmatpush1.msra.mxu0 0.0
    %58 = vmatprep.subr.mxu0 0.0
    %59 = vmatpush1.msra.mxu0 0.0
    %60 = vmatprep.subr.mxu0 0.0
    %61 = vmatpush1.msra.mxu0 0.0
    %62 = vmatprep.subr.mxu0 0.0
    %63 = vmatpush1.msra.mxu0 0.0
    %64 = vmatprep.subr.mxu0 0.0
    %65 = vmatpush1.msra.mxu0 0.0
    %66 = vmatprep.subr.mxu0 0.0
    %67 = vmatpush1.msra.mxu0 0.0
    %68 = vmatprep.subr.mxu0 0.0
    %69 = vmatpush1.msra.mxu0 0.0
    %70 = vmatprep.subr.mxu0 0.0
    %71 = vmatpush1.msra.mxu0 0.0
    %72 = vmatprep.subr.mxu0 0.0
    %73 = vmatpush1.msra.mxu0 0.0
    %74 = vmatprep.subr.mxu0 0.0
    %75 = vmatpush1.msra.mxu0 0.0
    %76 = vmatprep.subr.mxu0 0.0
    %77 = vmatpush1.msra.mxu0 0.0
    %78 = vmatprep.subr.mxu0 0.0
    %79 = vmatpush1.msra.mxu0 0.0
    %80 = vmatprep.subr.mxu0 0.0
    %81 = vmatpush1.msra.mxu0 0.0
    %82 = vmatprep.subr.mxu0 0.0
    %83 = vmatpush1.msra.mxu0 0.0
    %84 = vmatprep.subr.mxu0 0.0
    %85 = vmatpush1.msra.mxu0 0.0
    %86 = vmatprep.subr.mxu0 0.0
    %87 = vmatpush1.msra.mxu0 0.0
    %88 = vmatprep.subr.mxu0 0.0
    %89 = vmatpush1.msra.mxu0 0.0
    %90 = vmatprep.subr.mxu0 0.0
    %91 = vmatpush1.msra.mxu0 0.0
    %92 = vmatprep.subr.mxu0 0.0
    %93 = vmatpush1.msra.mxu0 0.0
    %94 = vmatprep.subr.mxu0 0.0
    %95 = vmatpush1.msra.mxu0 0.0
    %96 = vmatprep.subr.mxu0 0.0
    %97 = vmatpush1.msra.mxu0 0.0
    %98 = vmatprep.subr.mxu0 0.0
    %99 = vmatpush1.msra.mxu0 0.0
    %100 = vmatprep.subr.mxu0 0.0
    %101 = vmatpush1.msra.mxu0 0.0
    %102 = vmatprep.subr.mxu0 0.0
    %103 = vmatpush1.msra.mxu0 0.0
    %104 = vmatprep.subr.mxu0 0.0
    %105 = vmatpush1.msra.mxu0 0.0
    %106 = vmatprep.subr.mxu0 0.0
    %107 = vmatpush1.msra.mxu0 0.0
    %108 = vmatprep.subr.mxu0 0.0
    %109 = vmatpush1.msra.mxu0 0.0
    %110 = vmatprep.mubr.f32.mxu0 0.0
    %111 = vmatmul.mubr.f32.gmra.mrb[0].mxu0 %v38
    %v112 = vpop.f32.mrb[0].mxu0
    %v113 = vadd.f32 0.0, %v112
    %v114 = vpop.f32.mrb[0].mxu0
    %115 = vmatprep.mubr.f32.mxu0 0.0
    %116 = vmatmul.mubr.f32.gmra.mrb[0].mxu0 %v41
    %v117 = vpop.f32.mrb[0].mxu0
    %v118 = vadd.f32 0.0, %v117
    %v119 = vpop.f32.mrb[0].mxu0
    %120 = vdwg.mxu0
    %v121 = vmul.f32 %v113, 2.0
    %v122 = vmul.f32 %v118, 2.0
    %v123 = vsub.f32 %v35, %v121
    %v124 = vsub.f32 %v35, %v122
    %126 = vset.pattern.permute.xlu0 0
    %127 = vperm.xlu0 %126, %v25
    %v128 = vpop.permute.xlu0 %127
    %131 = vset.pattern.permute.xlu0 0
    %132 = vperm.xlu0 %131, %v26
    %v133 = vpop.permute.xlu0 %132
    %v135 = vadd.f32 %v123, %v128
    %v136 = vadd.f32 %v124, %v133
    %v137 = vmul.f32 %v135, -1.0
    %v138 = vmul.f32 %v136, -1.0
    %v139 = vmax.f32 %v137, %v138
    %v140 = vrot.slane %v139, 4
    %v141 = vmax.f32 %v139, %v140
    %v142 = vrot.slane %v141, 2
    %v143 = vmax.f32 %v141, %v142
    %v144 = vrot.slane %v143, 1
    %v145 = vmax.f32 %v143, %v144
    %v146 = vsub.f32 %v137, %v145
    %v147 = vsub.f32 %v138, %v145
    %v148 = vmul.f32 %v146, 1.442695
    %v149 = vpow.pop %v148
    %v150 = vmul.f32 %v147, 1.442695
    %v151 = vpow.pop %v150
    %v152 = vadd.f32 %v149, %v151
    %v153 = vrot.slane %v152, 4
    %v154 = vadd.f32 %v152, %v153
    %v155 = vrot.slane %v154, 2
    %v156 = vadd.f32 %v154, %v155
    %v157 = vrot.slane %v156, 1
    %v158 = vadd.f32 %v156, %v157
    %v159 = vrcp.pop %v158
    %v160 = vmul.f32 %v149, %v159
    %v161 = vmul.f32 %v151, %v159
    %162 = vst [vmem:[#allocation4] sm:$0xff] %v160
    %163 = vst [vmem:[#allocation4 + $0x8] sm:$0xff] %v161
    %vm164 = vcmask 130048
    %v166 = vsel %vm164, %v22, 0
    %168 = vmatprep.subr.mxu0 0.0
    %169 = vmatpush1.msra.mxu0 %v160
    %170 = vmatprep.subr.mxu0 0.0
    %171 = vmatpush1.msra.mxu0 %v161
    %172 = vmatprep.subr.mxu0 0.0
    %173 = vmatpush1.msra.mxu0 0.0
    %174 = vmatprep.subr.mxu0 0.0
    %175 = vmatpush1.msra.mxu0 0.0
    %176 = vmatprep.subr.mxu0 0.0
    %177 = vmatpush1.msra.mxu0 0.0
    %178 = vmatprep.subr.mxu0 0.0
    %179 = vmatpush1.msra.mxu0 0.0
    %180 = vmatprep.subr.mxu0 0.0
    %181 = vmatpush1.msra.mxu0 0.0
    %182 = vmatprep.subr.mxu0 0.0
    %183 = vmatpush1.msra.mxu0 0.0
    %184 = vmatprep.subr.mxu0 0.0
    %185 = vmatpush1.msra.mxu0 0.0
    %186 = vmatprep.subr.mxu0 0.0
    %187 = vmatpush1.msra.mxu0 0.0
    %188 = vmatprep.subr.mxu0 0.0
    %189 = vmatpush1.msra.mxu0 0.0
    %190 = vmatprep.subr.mxu0 0.0
    %191 = vmatpush1.msra.mxu0 0.0
    %192 = vmatprep.subr.mxu0 0.0
    %193 = vmatpush1.msra.mxu0 0.0
    %194 = vmatprep.subr.mxu0 0.0
    %195 = vmatpush1.msra.mxu0 0.0
    %196 = vmatprep.subr.mxu0 0.0
    %197 = vmatpush1.msra.mxu0 0.0
    %198 = vmatprep.subr.mxu0 0.0
    %199 = vmatpush1.msra.mxu0 0.0
    %200 = vmatprep.subr.mxu0 0.0
    %201 = vmatpush1.msra.mxu0 0.0
    %202 = vmatprep.subr.mxu0 0.0
    %203 = vmatpush1.msra.mxu0 0.0
    %204 = vmatprep.subr.mxu0 0.0
    %205 = vmatpush1.msra.mxu0 0.0
    %206 = vmatprep.subr.mxu0 0.0
    %207 = vmatpush1.msra.mxu0 0.0
    %208 = vmatprep.subr.mxu0 0.0
    %209 = vmatpush1.msra.mxu0 0.0
    %210 = vmatprep.subr.mxu0 0.0
    %211 = vmatpush1.msra.mxu0 0.0
    %212 = vmatprep.subr.mxu0 0.0
    %213 = vmatpush1.msra.mxu0 0.0
    %214 = vmatprep.subr.mxu0 0.0
    %215 = vmatpush1.msra.mxu0 0.0
    %216 = vmatprep.subr.mxu0 0.0
    %217 = vmatpush1.msra.mxu0 0.0
    %218 = vmatprep.subr.mxu0 0.0
    %219 = vmatpush1.msra.mxu0 0.0
    %220 = vmatprep.subr.mxu0 0.0
    %221 = vmatpush1.msra.mxu0 0.0
    %222 = vmatprep.subr.mxu0 0.0
    %223 = vmatpush1.msra.mxu0 0.0
    %224 = vmatprep.subr.mxu0 0.0
    %225 = vmatpush1.msra.mxu0 0.0
    %226 = vmatprep.subr.mxu0 0.0
    %227 = vmatpush1.msra.mxu0 0.0
    %228 = vmatprep.subr.mxu0 0.0
    %229 = vmatpush1.msra.mxu0 0.0
    %230 = vmatprep.subr.mxu0 0.0
    %231 = vmatpush1.msra.mxu0 0.0
    %232 = vmatprep.mubr.f32.mxu0 0.0
    %233 = vmatmul.mubr.f32.gmra.mrb[0].mxu0 %v166
    %v234 = vpop.f32.mrb[0].mxu0
    %v235 = vadd.f32 0.0, %v234
    %v236 = vpop.f32.mrb[0].mxu0
    %237 = vdwg.mxu0
    %238 = vst [vmem:[#allocation2] sm:$0xf] %v235
    // Predicated region
    $region18: #{tpu_custom_call.1} parent=1 // pred_check
      _
    $region19: #{tpu_custom_call.1} parent=1 // pred_check_branch
      %240 = sbr.rel (0) target = $region21
    $region20: #{tpu_custom_call.1} parent=1 // pred_region
      %s242 = ssub.s32 64, 64
      %243 = vsyncadd [#allocation3], %s242
      %s245 = sshll.u32 [#allocation2], 4
      %s246 = int_to_ptr.vmem [resolvable:$true] %s245
      %248 = dma.vmem_to_hbm [thread:$0]  %s246, 64, %s4, [#allocation3]
    $region21: #{tpu_custom_call.1} parent=1 // pred_fallthru
      _
    // Predicated region
    $region22: #{tpu_custom_call.1} parent=1 // pred_check
      _
    $region23: #{tpu_custom_call.1} parent=1 // pred_check_branch
      %250 = sbr.rel (0) target = $region25
    $region24: #{tpu_custom_call.1} parent=1 // pred_region
      %s252 = ssub.s32 256, 256
      %253 = vsyncadd [#allocation5], %s252
      %s254 = sshll.u32 [#allocation4], 4
      %s255 = int_to_ptr.vmem [resolvable:$true] %s254
      %260 = dma.vmem_to_hbm [thread:$0]  %s255, 256, %s5, [#allocation5], 128, 128, 8
    $region25: #{tpu_custom_call.1} parent=1 // pred_fallthru
      _
    // Predicated region
    $region26: #{tpu_custom_call.1} parent=1 // pred_check
      _
    $region27: #{tpu_custom_call.1} parent=1 // pred_check_branch
      %262 = sbr.rel (0) target = $region29
    $region28: #{tpu_custom_call.1} parent=1 // pred_region
      %263 = dma.done [#allocation3], 64
    $region29: #{tpu_custom_call.1} parent=1 // pred_fallthru
      _
    // Predicated region
    $region30: #{tpu_custom_call.1} parent=1 // pred_check
      _
    $region31: #{tpu_custom_call.1} parent=1 // pred_check_branch
      %265 = sbr.rel (0) target = $region33
    $region32: #{tpu_custom_call.1} parent=1 // pred_region
      %266 = dma.done [#allocation5], 256
    $region33: #{tpu_custom_call.1} parent=1 // pred_fallthru
      _
    %267 = vsyncpa [#allocation3], 1
    %268 = vsyncpa [#allocation5], 1

</llo_original>
